<compile_context>
chip_gen: v7x
topology: tpu7x:2x2x1
jax: 0.10.0
libtpu: 0.0.40
codegen_flags: <defaults>
</compile_context>

<pallas_src>
import functools
import itertools

import jax
import jax.numpy as jnp
from jax.experimental import pallas as pl
from jax.experimental.pallas import tpu as pltpu

EPS = 1e-15


def _cost_matrix_kernel(p_ref, t_ref, cost_ref, dot_acc, tlogt_acc, *, inv_hw):
    """cost[b,i,j] = mean_hw( t_j * (log(t_j+eps) - log(p_i+eps)) ).

    MXU reformulation:
        cost = ( sum_hw(t*log(t+eps))[:,None,:] - log(p+eps) @ t^T ) * (1/HW)
    Grid axis 1 is an HW-chunk reduction: partial dot products / row sums
    accumulate in VMEM scratch, the finalized cost is stored on the last chunk.
    """
    h = pl.program_id(1)

    @pl.when(h == 0)
    def _init():
        dot_acc[...] = jnp.zeros_like(dot_acc)
        tlogt_acc[...] = jnp.zeros_like(tlogt_acc)

    p = p_ref[...].astype(jnp.float32)            # (BB, K, HWC) predictions
    t = t_ref[...].astype(jnp.float32)            # (BB, K, HWC) targets
    logp = jnp.log(p + EPS)
    logt = jnp.log(t + EPS)

    # MXU: dot[b, i, j] = sum_h logp[b, i, h] * t[b, j, h]
    dot_acc[...] += jnp.einsum("bih,bjh->bij", logp, t,
                               preferred_element_type=jnp.float32)
    # XLU reduce: tlogt[b, j] = sum_h t[b, j, h] * logt[b, j, h]
    tlogt_acc[...] += jnp.sum(t * logt, axis=-1)

    @pl.when(h == pl.num_programs(1) - 1)
    def _finalize():
        cost = (tlogt_acc[...][:, None, :] - dot_acc[...]) * inv_hw
        cost_ref[...] = cost.astype(cost_ref.dtype)


def _choose_tiles(B, K, HW, *, max_chunk=16384,
                  input_budget_bytes=20 * 1024 * 1024):
    """Pick (BB, HW-chunk) so double-buffered inputs fit the VMEM budget."""
    if HW <= max_chunk:
        hwc = HW
    else:
        hwc = HW
        c = (max_chunk // 128) * 128
        while c >= 128:
            if HW % c == 0:
                hwc = c
                break
            c -= 128
        # TODO(synk): if HW has no 128-aligned divisor <= max_chunk we fall
        # back to streaming the whole HW row per step (correct, bigger block).
    per_b = 2 * 2 * K * hwc * 4          # 2 inputs x 2 pipeline buffers x f32
    bb = max(1, min(B, input_budget_bytes // per_b))
    while B % bb != 0:
        bb -= 1
    return bb, hwc


def _cost_matrix(pred_flat, aug_flat):
    B, K, HW = pred_flat.shape
    bb, hwc = _choose_tiles(B, K, HW)
    kernel = functools.partial(_cost_matrix_kernel, inv_hw=1.0 / float(HW))
    return pl.pallas_call(
        kernel,
        out_shape=jax.ShapeDtypeStruct((B, K, K), jnp.float32),
        grid_spec=pltpu.PrefetchScalarGridSpec(
            num_scalar_prefetch=0,
            grid=(B // bb, HW // hwc),
            in_specs=[
                pl.BlockSpec((bb, K, hwc), lambda b, h: (b, 0, h)),
                pl.BlockSpec((bb, K, hwc), lambda b, h: (b, 0, h)),
            ],
            out_specs=pl.BlockSpec((bb, K, K), lambda b, h: (b, 0, 0)),
            scratch_shapes=[
                pltpu.VMEM((bb, K, K), jnp.float32),   # partial logp @ t^T
                pltpu.VMEM((bb, K), jnp.float32),      # partial sum_hw(t*log t)
            ],
        ),
        compiler_params=pltpu.CompilerParams(
            dimension_semantics=("parallel", "arbitrary"),
            vmem_limit_bytes=32 * 1024 * 1024,
        ),
    )(pred_flat, aug_flat)


def _assignment_and_min_cost(cost_matrix, K):
    # TODO(synk): scipy.optimize.linear_sum_assignment (Hungarian) has no
    # Pallas/JAX equivalent; exact brute force over K! permutations is used
    # instead (same optimal cost for the small K exercised here).
    perms = jnp.asarray(list(itertools.permutations(range(K))),
                        dtype=jnp.int32)                          # (P, K)
    rows = jnp.arange(K, dtype=jnp.int32)
    assign_costs = cost_matrix[:, rows[None, :], perms]           # (B, P, K)
    totals = assign_costs.sum(axis=-1)                            # (B, P)
    best = jnp.argmin(totals, axis=-1)                            # (B,)
    return perms[best], totals.min(axis=-1)                       # (B,K), (B,)


def _permute_rows(x, row_perm):
    # x: (B, K, ...) ; permuted[b, k] = x[b, row_perm[b, k]]
    B = x.shape[0]
    return x[jnp.arange(B)[:, None], row_perm]


def equivariance_loss_forward(pred_masks, aug_masks, *args):
    """Mirror of EquivarianceLoss.forward for BKHW masks."""
    B, K, H, W = pred_masks.shape
    HW = H * W
    pred_flat = pred_masks.reshape(B, K, HW)
    aug_flat = aug_masks.reshape(B, K, HW)

    cost_matrix = _cost_matrix(pred_flat, aug_flat)               # (B, K, K)
    R2C, min_totals = _assignment_and_min_cost(cost_matrix, K)    # (B,K), (B,)
    row_perm = jnp.argsort(R2C, axis=1)                           # (B, K)

    pred_masks_permuted = _permute_rows(pred_masks, row_perm)     # (B, K, H, W)
    # l[b, j] == cost_matrix[b, row_perm[b, j], j]  =>  l.mean() below.
    loss = min_totals.mean() / K

    permuted_args = tuple(_permute_rows(a, row_perm) for a in args)
    return (loss, pred_masks_permuted[..., None]) + permuted_args


if __name__ == "__main__":
    key = jax.random.PRNGKey(0)
    B, K, H, W, D = 2, 4, 16, 16, 8

    k1, k2, k3 = jax.random.split(key, 3)
    # mask-like inputs: per-pixel softmax over K slots
    pred_masks = jax.nn.softmax(
        jax.random.normal(k1, (B, K, H, W), dtype=jnp.float32), axis=1)
    aug_masks = jax.nn.softmax(
        jax.random.normal(k2, (B, K, H, W), dtype=jnp.float32), axis=1)
    extra = jax.random.normal(k3, (B, K, D), dtype=jnp.float32)

    loss, pred_perm, extra_perm = equivariance_loss_forward(
        pred_masks, aug_masks, extra)
    jax.block_until_ready((loss, pred_perm, extra_perm))

    # pure-JAX reference for the loss (non-Pallas sanity check)
    def _ref_loss(pred, aug):
        p = pred.reshape(B, K, 1, H * W).astype(jnp.float32)
        t = aug.reshape(B, 1, K, H * W).astype(jnp.float32)
        cost = jnp.mean(t * (jnp.log(t + EPS) - jnp.log(p + EPS)), axis=-1)
        perms = jnp.asarray(list(itertools.permutations(range(K))), jnp.int32)
        rows = jnp.arange(K, dtype=jnp.int32)
        totals = cost[:, rows[None, :], perms].sum(-1)
        return totals.min(-1).mean() / K

    ref = _ref_loss(pred_masks, aug_masks)

    assert loss.shape == ()
    assert pred_perm.shape == (B, K, H, W, 1)
    assert extra_perm.shape == (B, K, D)
    assert bool(jnp.isfinite(loss))
    assert bool(jnp.allclose(loss, ref, rtol=2e-2, atol=1e-3))
    print("KERNEL_OK")
</pallas_src>

<mosaic_0001>
module attributes {stable_mosaic.version = 11 : i64} {
  func.func @_cost_matrix_kernel(%arg0: i32, %arg1: i32, %arg2: memref<2x4x256xf32, #tpu.memory_space<vmem>>, %arg3: memref<2x4x256xf32, #tpu.memory_space<vmem>>, %arg4: memref<2x4x4xf32, #tpu.memory_space<vmem>>, %arg5: memref<2x4x4xf32, #tpu.memory_space<vmem>>, %arg6: memref<2x4xf32, #tpu.memory_space<vmem>>) attributes {dimension_semantics = [#tpu.dimension_semantics<parallel>, #tpu.dimension_semantics<arbitrary>], iteration_bounds = array<i64: 1, 1>, scalar_prefetch = 0 : i64, scratch_operands = 2 : i64, tpu.core_type = #tpu.core_type<tc>, window_params = [{transform_indices = @transform_0, window_bounds = array<i64: 2, 4, 256>}, {transform_indices = @transform_1, window_bounds = array<i64: 2, 4, 256>}, {transform_indices = @transform_2, window_bounds = array<i64: 2, 4, 4>}]} {
    %c0_i32 = arith.constant 0 : i32
    %0 = arith.cmpi eq, %arg1, %c0_i32 : i32
    %1 = arith.extui %0 : i1 to i32
    %c0_i32_0 = arith.constant 0 : i32
    %2 = arith.cmpi ne, %1, %c0_i32_0 : i32
    scf.if %2 {
      %cst_21 = arith.constant 0.000000e+00 : f32
      %23 = vector.broadcast %cst_21 : f32 to vector<2x4x4xf32>
      %c0_22 = arith.constant 0 : index
      %c0_23 = arith.constant 0 : index
      %c0_24 = arith.constant 0 : index
      %24 = vector.load %arg5[%c0_22, %c0_23, %c0_24] : memref<2x4x4xf32, #tpu.memory_space<vmem>>, vector<2x4x4xf32>
      tpu.vector_store %arg5[%c0_22, %c0_23, %c0_24], %23 {strides = array<i32>} : memref<2x4x4xf32, #tpu.memory_space<vmem>>, vector<2x4x4xf32>,
      %cst_25 = arith.constant 0.000000e+00 : f32
      %25 = vector.broadcast %cst_25 : f32 to vector<2x4xf32>
      %c0_26 = arith.constant 0 : index
      %c0_27 = arith.constant 0 : index
      %26 = vector.load %arg6[%c0_26, %c0_27] : memref<2x4xf32, #tpu.memory_space<vmem>>, vector<2x4xf32>
      tpu.vector_store %arg6[%c0_26, %c0_27], %25 {strides = array<i32>} : memref<2x4xf32, #tpu.memory_space<vmem>>, vector<2x4xf32>,
    } else {
    }
    %c0 = arith.constant 0 : index
    %c0_1 = arith.constant 0 : index
    %c0_2 = arith.constant 0 : index
    %3 = vector.load %arg2[%c0, %c0_1, %c0_2] : memref<2x4x256xf32, #tpu.memory_space<vmem>>, vector<2x4x256xf32>
    %c0_3 = arith.constant 0 : index
    %c0_4 = arith.constant 0 : index
    %c0_5 = arith.constant 0 : index
    %4 = vector.load %arg3[%c0_3, %c0_4, %c0_5] : memref<2x4x256xf32, #tpu.memory_space<vmem>>, vector<2x4x256xf32>
    %cst = arith.constant 1.000000e-15 : f32
    %5 = vector.broadcast %cst : f32 to vector<2x4x256xf32>
    %6 = arith.addf %3, %5 : vector<2x4x256xf32>
    %7 = math.log %6 : vector<2x4x256xf32>
    %cst_6 = arith.constant 1.000000e-15 : f32
    %8 = vector.broadcast %cst_6 : f32 to vector<2x4x256xf32>
    %9 = arith.addf %4, %8 : vector<2x4x256xf32>
    %10 = math.log %9 : vector<2x4x256xf32>
    %c0_7 = arith.constant 0 : index
    %c0_8 = arith.constant 0 : index
    %c0_9 = arith.constant 0 : index
    %11 = vector.load %arg5[%c0_7, %c0_8, %c0_9] : memref<2x4x4xf32, #tpu.memory_space<vmem>>, vector<2x4x4xf32>
    "tpu.trace_start"() <{level = 10 : i32, message = "bih,bjh->bij"}> : () -> ()
    %cst_10 = arith.constant dense<0.000000e+00> : vector<2x4x4xf32>
    %12 = tpu.matmul %7, %4, %cst_10 {dimension_numbers = #tpu.dot_dimension_numbers<[2], [2], [1], [1], [0, 0, 0, 1, 1, 1], [0], [0]>} : vector<2x4x256xf32>, vector<2x4x256xf32>, vector<2x4x4xf32> -> vector<2x4x4xf32>
    "tpu.trace_stop"() : () -> ()
    %13 = arith.addf %11, %12 : vector<2x4x4xf32>
    %c0_11 = arith.constant 0 : index
    %c0_12 = arith.constant 0 : index
    %c0_13 = arith.constant 0 : index
    %14 = vector.load %arg5[%c0_11, %c0_12, %c0_13] : memref<2x4x4xf32, #tpu.memory_space<vmem>>, vector<2x4x4xf32>
    tpu.vector_store %arg5[%c0_11, %c0_12, %c0_13], %13 {strides = array<i32>} : memref<2x4x4xf32, #tpu.memory_space<vmem>>, vector<2x4x4xf32>,
    %c0_14 = arith.constant 0 : index
    %c0_15 = arith.constant 0 : index
    %15 = vector.load %arg6[%c0_14, %c0_15] : memref<2x4xf32, #tpu.memory_space<vmem>>, vector<2x4xf32>
    %16 = arith.mulf %4, %10 : vector<2x4x256xf32>
    %cst_16 = arith.constant dense<0.000000e+00> : vector<2x4xf32>
    %17 = vector.multi_reduction <add>, %16, %cst_16 [2] : vector<2x4x256xf32> to vector<2x4xf32>
    %18 = arith.addf %15, %17 : vector<2x4xf32>
    %c0_17 = arith.constant 0 : index
    %c0_18 = arith.constant 0 : index
    %19 = vector.load %arg6[%c0_17, %c0_18] : memref<2x4xf32, #tpu.memory_space<vmem>>, vector<2x4xf32>
    tpu.vector_store %arg6[%c0_17, %c0_18], %18 {strides = array<i32>} : memref<2x4xf32, #tpu.memory_space<vmem>>, vector<2x4xf32>,
    %c0_i32_19 = arith.constant 0 : i32
    %20 = arith.cmpi eq, %arg1, %c0_i32_19 : i32
    %21 = arith.extui %20 : i1 to i32
    %c0_i32_20 = arith.constant 0 : i32
    %22 = arith.cmpi ne, %21, %c0_i32_20 : i32
    scf.if %22 {
      %c0_21 = arith.constant 0 : index
      %c0_22 = arith.constant 0 : index
      %23 = vector.load %arg6[%c0_21, %c0_22] : memref<2x4xf32, #tpu.memory_space<vmem>>, vector<2x4xf32>
      %24 = vector.shape_cast %23 : vector<2x4xf32> to vector<2x1x4xf32>
      %c0_23 = arith.constant 0 : index
      %c0_24 = arith.constant 0 : index
      %c0_25 = arith.constant 0 : index
      %25 = vector.load %arg5[%c0_23, %c0_24, %c0_25] : memref<2x4x4xf32, #tpu.memory_space<vmem>>, vector<2x4x4xf32>
      %26 = vector.broadcast %24 : vector<2x1x4xf32> to vector<2x4x4xf32>
      %27 = arith.subf %26, %25 : vector<2x4x4xf32>
      %cst_26 = arith.constant 3.906250e-03 : f32
      %28 = vector.broadcast %cst_26 : f32 to vector<2x4x4xf32>
      %29 = arith.mulf %27, %28 : vector<2x4x4xf32>
      %c0_27 = arith.constant 0 : index
      %c0_28 = arith.constant 0 : index
      %c0_29 = arith.constant 0 : index
      %30 = vector.load %arg4[%c0_27, %c0_28, %c0_29] : memref<2x4x4xf32, #tpu.memory_space<vmem>>, vector<2x4x4xf32>
      tpu.vector_store %arg4[%c0_27, %c0_28, %c0_29], %29 {strides = array<i32>} : memref<2x4x4xf32, #tpu.memory_space<vmem>>, vector<2x4x4xf32>,
    } else {
    }
    return
  }
  func.func @transform_0(%arg0: i32, %arg1: i32) -> (i32, i32, i32) {
    %c0_i32 = arith.constant 0 : i32
    %c0_i32_0 = arith.constant 0 : i32
    return %arg0, %c0_i32, %arg1 : i32, i32, i32
  }
  func.func @transform_1(%arg0: i32, %arg1: i32) -> (i32, i32, i32) {
    %c0_i32 = arith.constant 0 : i32
    %c0_i32_0 = arith.constant 0 : i32
    return %arg0, %c0_i32, %arg1 : i32, i32, i32
  }
  func.func @transform_2(%arg0: i32, %arg1: i32) -> (i32, i32, i32) {
    %c0_i32 = arith.constant 0 : i32
    %c0_i32_0 = arith.constant 0 : i32
    %c0_i32_1 = arith.constant 0 : i32
    return %arg0, %c0_i32, %c0_i32_0 : i32, i32, i32
  }
}

</mosaic_0001>

<llo_original>
// kernel: tpu_custom_call.1
$region0: #{tpu_custom_call.1}
  #allocation0 [shape = 'u32[]', space=smem, size = 0x4, offset = 0x4, fixed_abs, tag = 'smem constant byte address 0x4 - core index']
  #allocation1 [shape = 'u32[144,128]{1,0:T(1,128)}', space=vmem, size = 0x12000, scoped, tag = 'internal scratch']
  #allocation2 [shape = 'f32[2,4,4]{2,1,0:T(4,128)}', space=vmem, size = 0x1000, scoped, tag = 'scratch operand']
  #allocation3 [shape = 'f32[2,4]{1,0:T(2,128)}', space=vmem, size = 0x400, scoped, tag = 'scratch operand']
  %s0 = inlined_call_operand.hbm [shape: f32[2,4,256], index: 0, kind: input, shape index: {}]
  %s1 = inlined_call_operand.hbm [shape: f32[2,4,256], index: 1, kind: input, shape index: {}]
  %s2 = inlined_call_operand.hbm [shape: f32[2,4,4], index: 2, kind: output, shape index: {}]
  %s3 = sld [smem:[#allocation0]]
  $region34: #{tpu_custom_call.1} parent=0
    _
  %s5 = ssub.s32 1, %s3
  %s6 = scalar_select 0, %s5, %s3
  $region1: #{tpu_custom_call.1} parent=0
    #allocation4 [shape = 'u8[8192]{0}', space=vmem, size = 0x2000, scoped, tag = 'input window, operand 0, single buffered']
    #allocation5 [shape = 's32[1]{0}', space=sflag, size = 0x4, scoped, tag = 'scoped memory for tpu_custom_call.1']
    #allocation6 [shape = 's32[1]{0}', space=sflag, size = 0x4, scoped, tag = 'scoped memory for tpu_custom_call.1']
    #allocation7 [shape = 'u8[8192]{0}', space=vmem, size = 0x2000, scoped, tag = 'input window, operand 1, single buffered']
    #allocation8 [shape = 's32[1]{0}', space=sflag, size = 0x4, scoped, tag = 'scoped memory for tpu_custom_call.1']
    #allocation9 [shape = 'u8[4096]{0}', space=vmem, size = 0x1000, scoped, tag = 'output window, operand 0, single buffered']
    %7 = vsyncpa [#allocation5], 0
    %8 = vsyncpa [#allocation8], 0
    %9 = vsyncpa [#allocation6], 0
    // Predicated region
    $region2: #{tpu_custom_call.1} parent=1 // pred_check
      _
    $region3: #{tpu_custom_call.1} parent=1 // pred_check_branch
      %11 = sbr.rel (0) target = $region5
    $region4: #{tpu_custom_call.1} parent=1 // pred_region
      %s13 = ssub.s32 256, 256
      %14 = vsyncadd [#allocation5], %s13
      %s15 = sshll.u32 [#allocation4], 4
      %s16 = int_to_ptr.vmem [resolvable:$true] %s15
      %21 = dma.hbm_to_vmem [thread:$0]  %s0, 256, %s16, [#allocation5], 128, 128, 8
    $region5: #{tpu_custom_call.1} parent=1 // pred_fallthru
      _
    // Predicated region
    $region6: #{tpu_custom_call.1} parent=1 // pred_check
      _
    $region7: #{tpu_custom_call.1} parent=1 // pred_check_branch
      %23 = sbr.rel (0) target = $region9
    $region8: #{tpu_custom_call.1} parent=1 // pred_region
      %s25 = ssub.s32 256, 256
      %26 = vsyncadd [#allocation8], %s25
      %s27 = sshll.u32 [#allocation7], 4
      %s28 = int_to_ptr.vmem [resolvable:$true] %s27
      %33 = dma.hbm_to_vmem [thread:$0]  %s1, 256, %s28, [#allocation8], 128, 128, 8
    $region9: #{tpu_custom_call.1} parent=1 // pred_fallthru
      _
    // Predicated region
    $region10: #{tpu_custom_call.1} parent=1 // pred_check
      _
    $region11: #{tpu_custom_call.1} parent=1 // pred_check_branch
      %35 = sbr.rel (0) target = $region13
    $region12: #{tpu_custom_call.1} parent=1 // pred_region
      %36 = dma.done [#allocation5], 256
    $region13: #{tpu_custom_call.1} parent=1 // pred_fallthru
      _
    // Predicated region
    $region14: #{tpu_custom_call.1} parent=1 // pred_check
      _
    $region15: #{tpu_custom_call.1} parent=1 // pred_check_branch
      %38 = sbr.rel (0) target = $region17
    $region16: #{tpu_custom_call.1} parent=1 // pred_region
      %39 = dma.done [#allocation8], 256
    $region17: #{tpu_custom_call.1} parent=1 // pred_fallthru
      _
    %p40 = scmp.eq.s32.totalorder 0, 0
    // Predicated region
    $region18: #{tpu_custom_call.1} parent=1 // pred_check
      %p41 = pneg %p40
    $region19: #{tpu_custom_call.1} parent=1 // pred_check_branch
      %43 = sbr.rel (%p41) target = $region21
    $region20: #{tpu_custom_call.1} parent=1 // pred_region
      %vm44 = vcmask 27648
      %45 = vst.msk [vmem:[#allocation2] sm:$0xf] %vm44, 0.0
      %46 = vst.msk [vmem:[#allocation2 + $0x4] sm:$0xf] %vm44, 0.0
      %vm47 = vcmask 25600
      %48 = vst.msk [vmem:[#allocation3] sm:$0x3] %vm47, 0.0
    $region21: #{tpu_custom_call.1} parent=1 // pred_fallthru
      _
    %v49 = vld [vmem:[#allocation4] sm:$0xff]
    %v50 = vld [vmem:[#allocation4 + $0x8] sm:$0xff]
    %v51 = vld [vmem:[#allocation7] sm:$0xff]
    %v52 = vld [vmem:[#allocation7 + $0x8] sm:$0xff]
    %v53 = vadd.f32 %v49, 1e-15
    %v54 = vadd.f32 %v50, 1e-15
    %v55 = vlog2.pop %v53
    %v56 = vmul.f32 %v55, 0.6931472
    %v57 = vlog2.pop %v54
    %v58 = vmul.f32 %v57, 0.6931472
    %v59 = vadd.f32 %v51, 1e-15
    %v60 = vadd.f32 %v52, 1e-15
    %v61 = vlog2.pop %v59
    %v62 = vmul.f32 %v61, 0.6931472
    %v63 = vlog2.pop %v60
    %v64 = vmul.f32 %v63, 0.6931472
    %v65 = vld [vmem:[#allocation2] sm:$0xf]
    %v66 = vld [vmem:[#allocation2 + $0x4] sm:$0xf]
    %v68 = vcombine.high %v56, %v56
    %v71 = vcombine.high %v51, %v51
    %73 = vmatprep.subr.mxu0 %v71
    %74 = vmatpush1.xpose.msra.mxu0 %v51
    %75 = vmatprep.subr.mxu0 0.0
    %76 = vmatpush1.xpose.msra.mxu0 0.0
    %77 = vmatprep.subr.mxu0 0.0
    %78 = vmatpush1.xpose.msra.mxu0 0.0
    %79 = vmatprep.subr.mxu0 0.0
    %80 = vmatpush1.xpose.msra.mxu0 0.0
    %81 = vmatprep.subr.mxu0 0.0
    %82 = vmatpush1.xpose.msra.mxu0 0.0
    %83 = vmatprep.subr.mxu0 0.0
    %84 = vmatpush1.xpose.msra.mxu0 0.0
    %85 = vmatprep.subr.mxu0 0.0
    %86 = vmatpush1.xpose.msra.mxu0 0.0
    %87 = vmatprep.subr.mxu0 0.0
    %88 = vmatpush1.xpose.msra.mxu0 0.0
    %89 = vmatprep.subr.mxu0 0.0
    %90 = vmatpush1.xpose.msra.mxu0 0.0
    %91 = vmatprep.subr.mxu0 0.0
    %92 = vmatpush1.xpose.msra.mxu0 0.0
    %93 = vmatprep.subr.mxu0 0.0
    %94 = vmatpush1.xpose.msra.mxu0 0.0
    %95 = vmatprep.subr.mxu0 0.0
    %96 = vmatpush1.xpose.msra.mxu0 0.0
    %97 = vmatprep.subr.mxu0 0.0
    %98 = vmatpush1.xpose.msra.mxu0 0.0
    %99 = vmatprep.subr.mxu0 0.0
    %100 = vmatpush1.xpose.msra.mxu0 0.0
    %101 = vmatprep.subr.mxu0 0.0
    %102 = vmatpush1.xpose.msra.mxu0 0.0
    %103 = vmatprep.subr.mxu0 0.0
    %104 = vmatpush1.xpose.msra.mxu0 0.0
    %105 = vmatprep.subr.mxu0 0.0
    %106 = vmatpush1.xpose.msra.mxu0 0.0
    %107 = vmatprep.subr.mxu0 0.0
    %108 = vmatpush1.xpose.msra.mxu0 0.0
    %109 = vmatprep.subr.mxu0 0.0
    %110 = vmatpush1.xpose.msra.mxu0 0.0
    %111 = vmatprep.subr.mxu0 0.0
    %112 = vmatpush1.xpose.msra.mxu0 0.0
    %113 = vmatprep.subr.mxu0 0.0
    %114 = vmatpush1.xpose.msra.mxu0 0.0
    %115 = vmatprep.subr.mxu0 0.0
    %116 = vmatpush1.xpose.msra.mxu0 0.0
    %117 = vmatprep.subr.mxu0 0.0
    %118 = vmatpush1.xpose.msra.mxu0 0.0
    %119 = vmatprep.subr.mxu0 0.0
    %120 = vmatpush1.xpose.msra.mxu0 0.0
    %121 = vmatprep.subr.mxu0 0.0
    %122 = vmatpush1.xpose.msra.mxu0 0.0
    %123 = vmatprep.subr.mxu0 0.0
    %124 = vmatpush1.xpose.msra.mxu0 0.0
    %125 = vmatprep.subr.mxu0 0.0
    %126 = vmatpush1.xpose.msra.mxu0 0.0
    %127 = vmatprep.subr.mxu0 0.0
    %128 = vmatpush1.xpose.msra.mxu0 0.0
    %129 = vmatprep.subr.mxu0 0.0
    %130 = vmatpush1.xpose.msra.mxu0 0.0
    %131 = vmatprep.subr.mxu0 0.0
    %132 = vmatpush1.xpose.msra.mxu0 0.0
    %133 = vmatprep.subr.mxu0 0.0
    %134 = vmatpush1.xpose.msra.mxu0 0.0
    %135 = vmatprep.subr.mxu0 0.0
    %136 = vmatpush1.xpose.msra.mxu0 0.0
    %137 = vmatprep.mubr.f32.mxu0 %v68
    %138 = vmatmul.mubr.f32.gmra.mrb[0].mxu0 %v56
    %v139 = vpop.f32.mrb[0].mxu0
    %v140 = vadd.f32 0.0, %v139
    %v141 = vpop.f32.mrb[0].mxu0
    %142 = vdwg.mxu0
    %v144 = vcombine.high %v58, %v58
    %v147 = vcombine.high %v52, %v52
    %149 = vmatprep.subr.mxu0 %v147
    %150 = vmatpush1.xpose.msra.mxu0 %v52
    %151 = vmatprep.subr.mxu0 0.0
    %152 = vmatpush1.xpose.msra.mxu0 0.0
    %153 = vmatprep.subr.mxu0 0.0
    %154 = vmatpush1.xpose.msra.mxu0 0.0
    %155 = vmatprep.subr.mxu0 0.0
    %156 = vmatpush1.xpose.msra.mxu0 0.0
    %157 = vmatprep.subr.mxu0 0.0
    %158 = vmatpush1.xpose.msra.mxu0 0.0
    %159 = vmatprep.subr.mxu0 0.0
    %160 = vmatpush1.xpose.msra.mxu0 0.0
    %161 = vmatprep.subr.mxu0 0.0
    %162 = vmatpush1.xpose.msra.mxu0 0.0
    %163 = vmatprep.subr.mxu0 0.0
    %164 = vmatpush1.xpose.msra.mxu0 0.0
    %165 = vmatprep.subr.mxu0 0.0
    %166 = vmatpush1.xpose.msra.mxu0 0.0
    %167 = vmatprep.subr.mxu0 0.0
    %168 = vmatpush1.xpose.msra.mxu0 0.0
    %169 = vmatprep.subr.mxu0 0.0
    %170 = vmatpush1.xpose.msra.mxu0 0.0
    %171 = vmatprep.subr.mxu0 0.0
    %172 = vmatpush1.xpose.msra.mxu0 0.0
    %173 = vmatprep.subr.mxu0 0.0
    %174 = vmatpush1.xpose.msra.mxu0 0.0
    %175 = vmatprep.subr.mxu0 0.0
    %176 = vmatpush1.xpose.msra.mxu0 0.0
    %177 = vmatprep.subr.mxu0 0.0
    %178 = vmatpush1.xpose.msra.mxu0 0.0
    %179 = vmatprep.subr.mxu0 0.0
    %180 = vmatpush1.xpose.msra.mxu0 0.0
    %181 = vmatprep.subr.mxu0 0.0
    %182 = vmatpush1.xpose.msra.mxu0 0.0
    %183 = vmatprep.subr.mxu0 0.0
    %184 = vmatpush1.xpose.msra.mxu0 0.0
    %185 = vmatprep.subr.mxu0 0.0
    %186 = vmatpush1.xpose.msra.mxu0 0.0
    %187 = vmatprep.subr.mxu0 0.0
    %188 = vmatpush1.xpose.msra.mxu0 0.0
    %189 = vmatprep.subr.mxu0 0.0
    %190 = vmatpush1.xpose.msra.mxu0 0.0
    %191 = vmatprep.subr.mxu0 0.0
    %192 = vmatpush1.xpose.msra.mxu0 0.0
    %193 = vmatprep.subr.mxu0 0.0
    %194 = vmatpush1.xpose.msra.mxu0 0.0
    %195 = vmatprep.subr.mxu0 0.0
    %196 = vmatpush1.xpose.msra.mxu0 0.0
    %197 = vmatprep.subr.mxu0 0.0
    %198 = vmatpush1.xpose.msra.mxu0 0.0
    %199 = vmatprep.subr.mxu0 0.0
    %200 = vmatpush1.xpose.msra.mxu0 0.0
    %201 = vmatprep.subr.mxu0 0.0
    %202 = vmatpush1.xpose.msra.mxu0 0.0
    %203 = vmatprep.subr.mxu0 0.0
    %204 = vmatpush1.xpose.msra.mxu0 0.0
    %205 = vmatprep.subr.mxu0 0.0
    %206 = vmatpush1.xpose.msra.mxu0 0.0
    %207 = vmatprep.subr.mxu0 0.0
    %208 = vmatpush1.xpose.msra.mxu0 0.0
    %209 = vmatprep.subr.mxu0 0.0
    %210 = vmatpush1.xpose.msra.mxu0 0.0
    %211 = vmatprep.subr.mxu0 0.0
    %212 = vmatpush1.xpose.msra.mxu0 0.0
    %213 = vmatprep.mubr.f32.mxu0 %v144
    %214 = vmatmul.mubr.f32.gmra.mrb[0].mxu0 %v58
    %v215 = vpop.f32.mrb[0].mxu0
    %v216 = vadd.f32 0.0, %v215
    %v217 = vpop.f32.mrb[0].mxu0
    %218 = vdwg.mxu0
    %v219 = vadd.f32 %v65, %v140
    %v220 = vadd.f32 %v66, %v216
    %vm221 = vcmask 27648
    %222 = vst.msk [vmem:[#allocation2] sm:$0xf] %vm221, %v219
    %223 = vst.msk [vmem:[#allocation2 + $0x4] sm:$0xf] %vm221, %v220
    %v224 = vld [vmem:[#allocation3] sm:$0x3]
    %v225 = vmul.f32 %v51, %v62
    %v226 = vmul.f32 %v52, %v64
    %v229 = vcombine.high %v225, %v225
    %v230 = vcombine.high %v226, %v226
    %vm233 = vcmask 1043456
    %v234 = vsel %vm233, %v225, 0.0
    %v235 = vsel %vm233, %v229, 0.0
    %v236 = vadd.f32 %v234, %v235
    %237 = vadd.xlane.f32.xlu0 %v236
    %v238 = vpop.xlane.xlu0 %237
    %v239 = vsel %vm233, %v226, 0.0
    %v240 = vsel %vm233, %v230, 0.0
    %v241 = vadd.f32 %v239, %v240
    %242 = vadd.xlane.f32.xlu0 %v241
    %v243 = vpop.xlane.xlu0 %242
    %v246 = vlaneseq
    %v247 = vand.u32 %v246, 127
    %v248 = vlaneseq
    %v249 = vshrl.u32 %v248, 7
    %v250 = vsub.s32 %v247, %v249
    %v251 = vrot.slane %v238, %v250
    %v252 = vlaneseq
    %v253 = vshrl.u32 %v252, 7
    %v254 = vsub.s32 %v247, %v253
    %v255 = vrot.slane %v243, %v254
    %vm256 = vcmask 1041409
    %v257 = vsel %vm256, %v255, %v251
    %v259 = vadd.f32 %v224, %v257
    %vm260 = vcmask 25600
    %261 = vst.msk [vmem:[#allocation3] sm:$0x3] %vm260, %v259
    // Predicated region
    $region22: #{tpu_custom_call.1} parent=1 // pred_check
      %p262 = pneg %p40
    $region23: #{tpu_custom_call.1} parent=1 // pred_check_branch
      %264 = sbr.rel (%p262) target = $region25
    $region24: #{tpu_custom_call.1} parent=1 // pred_region
      %v265 = vld [vmem:[#allocation3] sm:$0x3]
      %v268 = vunpack.c.l.s4 1966171168
      %v269 = vunpack.c.0.s8 %v268
      %v270 = vlaneseq
      %v271 = vshrl.u32 %v270, 7
      %v272 = vsub.s32 %v269, %v271
      %v273 = vrot.slane %v265, %v272
      %v274 = vcombine.high %v273, %v273
      %v276 = vunpack.c.l.s4 1966171168
      %v277 = vunpack.c.0.s8 %v276
      %v278 = vlaneseq
      %v279 = vshrl.u32 %v278, 7
      %v280 = vsub.s32 %v277, %v279
      %v281 = vrot.slane %v273, %v280
      %v283 = vunpack.c.l.s4 1966171168
      %v284 = vunpack.c.0.s8 %v283
      %v285 = vlaneseq
      %v286 = vshrl.u32 %v285, 7
      %v287 = vsub.s32 %v284, %v286
      %v288 = vrot.slane %v274, %v287
      %v289 = vld [vmem:[#allocation2] sm:$0xf]
      %v290 = vld [vmem:[#allocation2 + $0x4] sm:$0xf]
      %v291 = vlaneseq
      %v292 = vshrl.u32 %v291, 7
      %v293 = vsub.s32 0, %v292
      %v294 = vrot.slane %v281, %v293
      %v295 = vlaneseq
      %v296 = vshrl.u32 %v295, 7
      %v297 = vsub.s32 0, %v296
      %v298 = vrot.slane %v288, %v297
      %v301 = vsub.f32 %v294, %v289
      %v302 = vsub.f32 %v298, %v290
      %v303 = vmul.f32 %v301, 0.00390625
      %v304 = vmul.f32 %v302, 0.00390625
      %305 = vst.msk [vmem:[#allocation9] sm:$0xf] %vm221, %v303
      %306 = vst.msk [vmem:[#allocation9 + $0x4] sm:$0xf] %vm221, %v304
    $region25: #{tpu_custom_call.1} parent=1 // pred_fallthru
      _
    // Predicated region
    $region26: #{tpu_custom_call.1} parent=1 // pred_check
      _
    $region27: #{tpu_custom_call.1} parent=1 // pred_check_branch
      %308 = sbr.rel (0) target = $region29
    $region28: #{tpu_custom_call.1} parent=1 // pred_region
      %s310 = ssub.s32 128, 128
      %311 = vsyncadd [#allocation6], %s310
      %s312 = sshll.u32 [#allocation9], 4
      %s313 = int_to_ptr.vmem [resolvable:$true] %s312
      %318 = dma.vmem_to_hbm [thread:$0]  %s313, 128, %s2, [#allocation6], 64, 64, 4
    $region29: #{tpu_custom_call.1} parent=1 // pred_fallthru
      _
    // Predicated region
    $region30: #{tpu_custom_call.1} parent=1 // pred_check
      _
    $region31: #{tpu_custom_call.1} parent=1 // pred_check_branch
      %320 = sbr.rel (0) target = $region33
    $region32: #{tpu_custom_call.1} parent=1 // pred_region
      %321 = dma.done [#allocation6], 128
    $region33: #{tpu_custom_call.1} parent=1 // pred_fallthru
      _
    %322 = vsyncpa [#allocation5], 1
    %323 = vsyncpa [#allocation8], 1
    %324 = vsyncpa [#allocation6], 1

</llo_original>
